<compile_context>
chip_gen: v7x
topology: tpu7x:2x2x1
jax: 0.10.0
libtpu: 0.0.40
codegen_flags: <defaults>
</compile_context>

<pallas_src>
import functools
from typing import NamedTuple

import jax
import jax.numpy as jnp
from jax.experimental import pallas as pl
from jax.experimental.pallas import tpu as pltpu


# ---------------------------------------------------------------------------
# Kernels
# ---------------------------------------------------------------------------
def _masked_tile(f_ref, step, tk, k_total, needs_mask):
    """Load the (n, tk) feature tile; zero columns past the true K extent."""
    f = f_ref[...]
    if needs_mask:
        col = jax.lax.broadcasted_iota(jnp.int32, f.shape, 1) + step * tk
        f = jnp.where(col < k_total, f, jnp.zeros_like(f))
    return f


def _partial_gram_kernel(f_ref, g_ref, *, tk, kt_per_split, k_total, inv_denom,
                         needs_mask, precision):
    """One (core-split, K-step) grid point: G_partial += F_tile . F_tile^T."""
    c = pl.program_id(0)
    kk = pl.program_id(1)

    @pl.when(kk == 0)
    def _():
        g_ref[...] = jnp.zeros_like(g_ref)

    step = c * kt_per_split + kk
    f = _masked_tile(f_ref, step, tk, k_total, needs_mask)
    g_ref[...] += jax.lax.dot_general(
        f, f,
        dimension_numbers=(((1,), (1,)), ((), ())),  # contract K of both; no f.T copy
        preferred_element_type=jnp.float32,
        precision=precision,
    )

    @pl.when(kk == pl.num_programs(1) - 1)
    def _():
        g_ref[...] = g_ref[...] * inv_denom


def _fused_loss_kernel(f_ref, t_ref, loss_ref, acc_ref, *, tk, k_total, inv_denom,
                       needs_mask, precision):
    """Single-core path: gram accumulation + MSE vs target fused in one kernel."""
    kk = pl.program_id(0)

    @pl.when(kk == 0)
    def _():
        acc_ref[...] = jnp.zeros_like(acc_ref)

    f = _masked_tile(f_ref, kk, tk, k_total, needs_mask)
    acc_ref[...] += jax.lax.dot_general(
        f, f,
        dimension_numbers=(((1,), (1,)), ((), ())),
        preferred_element_type=jnp.float32,
        precision=precision,
    )

    @pl.when(kk == pl.num_programs(0) - 1)
    def _():
        diff = acc_ref[...] * inv_denom - t_ref[...]
        loss_ref[0, 0] = jnp.mean(diff * diff)


# ---------------------------------------------------------------------------
# Tiling plan / wrapper helpers
# ---------------------------------------------------------------------------
def _round_up(v, m):
    return ((v + m - 1) // m) * m


def _vmem_capacity_bytes():
    try:
        return int(pltpu.get_tpu_info().vmem_capacity_bytes)
    except Exception:
        return 64 << 20            # conservative fallback: v7x per-TensorCore VMEM


class _Plan(NamedTuple):
    tk: int            # K-tile width (multiple of 128, or covers all of K)
    kt_total: int      # number of K tiles covering K
    n_split: int       # 1 or 2: K-reduction split across TensorCores
    kt_per: int        # K steps per split
    needs_mask: bool   # ragged last tile / over-allocated split step needs masking
    buffer_depth: int  # feature-stream multi-buffer depth
    vmem_limit: int    # vmem_limit_bytes for CompilerParams


def _plan(n, k, dtype_bytes, tile_cols=None):
    cap = _vmem_capacity_bytes()
    packing = max(1, 4 // dtype_bytes)
    rows = _round_up(max(n, 1), 8 * packing)      # sublane-padded rows actually DMA'd
    bytes_per_col = rows * dtype_bytes

    n8 = max(_round_up(n, 8), 8)
    n128 = max(_round_up(n, 128), 128)
    gram_vmem = 4 * n8 * n128 * 4                 # resident (n, n) f32 copies (acc/out/target)
    if gram_vmem > cap // 2:
        # TODO(synk): tile G over output rows/cols (+ exploit symmetry) for very large n.
        raise NotImplementedError(
            f"StyleLoss Pallas kernel: (n, n)={n}x{n} gram accumulator does not fit "
            "VMEM; output tiling is not implemented.")

    # 2-way K-reduction split (v7x megacore: each TensorCore streams half of F).
    # On single-TC chips it only costs the partial-gram writeback, so require
    # that to be <= ~10% of the feature stream.
    want_split = (k >= 256) and (40 * n * n * 4 <= n * k * dtype_bytes)

    nbuf_target = 3
    stream_budget = cap // 2                      # VMEM for the buffered feature stream
    max_cols = max(128, stream_budget // (nbuf_target * bytes_per_col))

    if tile_cols is not None:                     # tuning / test override
        tk = min(int(tile_cols), _round_up(k, 128))
        if tk < k and tk % 128 != 0:
            raise ValueError("tile_cols must be a multiple of 128 (or cover all of K)")
    elif k <= max_cols and not want_split:
        tk = k                                    # single step; full K needs no 128-multiple
    else:
        tk = max(128, (max_cols // 128) * 128)
        if want_split:                            # keep >= 2 K steps so both cores get work
            tk = min(tk, _round_up(pl.cdiv(k, 2), 128))
        tk = min(tk, _round_up(k, 128))

    kt_total = pl.cdiv(k, tk)
    n_split = 2 if (want_split and kt_total >= 2) else 1
    kt_per = pl.cdiv(kt_total, n_split)
    needs_mask = n_split * kt_per * tk > k
    buffer_depth = 3 if kt_per >= 4 else 2

    vmem_limit = buffer_depth * bytes_per_col * tk + gram_vmem + (2 << 20)
    vmem_limit = int(min(max(vmem_limit, 16 << 20), (cap * 3) // 4))
    return _Plan(tk, kt_total, n_split, kt_per, needs_mask, buffer_depth, vmem_limit)


def _feature_blockspec(block_shape, index_map, depth):
    if depth > 2:
        try:
            return pl.BlockSpec(block_shape, index_map, pipeline_mode=pl.Buffered(depth))
        except Exception:      # pipeline_mode unavailable on this jax version
            pass
    return pl.BlockSpec(block_shape, index_map)


def _features(x, stream_bf16=False):
    a, b, c, d = x.shape
    n, k = a * b, c * d
    f = x.reshape(n, k)                 # free reshape; native dtype (no f32 up-cast copy)
    if stream_bf16 and f.dtype == jnp.float32:
        f = f.astype(jnp.bfloat16)      # halves the HBM stream; MXU still accumulates f32
    return f, n, k, float(a * b * c * d)


def _partial_grams(feats, n, k, denom, plan, precision):
    kt_total, kt_per = plan.kt_total, plan.kt_per

    if plan.n_split * kt_per == kt_total:
        f_map = lambda c, kk: (0, c * kt_per + kk)
    else:
        # Odd number of K steps under a 2-way split: clamp the over-allocated
        # step to the last valid block; its contribution is masked to zero.
        last = kt_total - 1
        f_map = lambda c, kk: (0, jnp.minimum(c * kt_per + kk, last))

    kernel = functools.partial(
        _partial_gram_kernel, tk=plan.tk, kt_per_split=kt_per, k_total=k,
        inv_denom=1.0 / denom, needs_mask=plan.needs_mask, precision=precision)

    return pl.pallas_call(
        kernel,
        out_shape=jax.ShapeDtypeStruct((plan.n_split, n, n), jnp.float32),
        grid_spec=pltpu.PrefetchScalarGridSpec(
            num_scalar_prefetch=0,
            grid=(plan.n_split, kt_per),
            in_specs=[_feature_blockspec((n, plan.tk), f_map, plan.buffer_depth)],
            out_specs=pl.BlockSpec((None, n, n), lambda c, kk: (c, 0, 0)),
        ),
        compiler_params=pltpu.CompilerParams(
            dimension_semantics=("parallel", "arbitrary"),
            vmem_limit_bytes=plan.vmem_limit,
        ),
    )(feats)


# ---------------------------------------------------------------------------
# Public API
# ---------------------------------------------------------------------------
def gram_matrix_pallas(x, *, stream_bf16=False, precision=None, tile_cols=None):
    """Pallas equivalent of StyleLoss.gram_matrix (x is NCHW)."""
    feats, n, k, denom = _features(x, stream_bf16)
    plan = _plan(n, k, jnp.dtype(feats.dtype).itemsize, tile_cols)
    partials = _partial_grams(feats, n, k, denom, plan, precision)
    return partials[0] if plan.n_split == 1 else jnp.sum(partials, axis=0)


def style_loss_pallas(x, target_gram, *, stream_bf16=False, precision=None, tile_cols=None):
    """Pallas equivalent of StyleLoss.forward: MSE(gram(x), target_gram)."""
    feats, n, k, denom = _features(x, stream_bf16)
    plan = _plan(n, k, jnp.dtype(feats.dtype).itemsize, tile_cols)
    target_f32 = target_gram.astype(jnp.float32)

    if plan.n_split > 1:
        # K reduction split across TensorCores: sum the per-core partial grams and
        # take the MSE in a tiny XLA epilogue (O(n^2), negligible vs the F stream).
        g = jnp.sum(_partial_grams(feats, n, k, denom, plan, precision), axis=0)
        diff = g - target_f32
        return jnp.mean(diff * diff)

    kernel = functools.partial(
        _fused_loss_kernel, tk=plan.tk, k_total=k, inv_denom=1.0 / denom,
        needs_mask=plan.needs_mask, precision=precision)
    loss = pl.pallas_call(
        kernel,
        out_shape=jax.ShapeDtypeStruct((1, 1), jnp.float32),
        grid_spec=pltpu.PrefetchScalarGridSpec(
            num_scalar_prefetch=0,
            grid=(plan.kt_total,),
            in_specs=[
                _feature_blockspec((n, plan.tk), lambda kk: (0, kk), plan.buffer_depth),
                pl.BlockSpec((n, n), lambda kk: (0, 0)),
            ],
            out_specs=pl.BlockSpec((1, 1), lambda kk: (0, 0)),
            scratch_shapes=[pltpu.VMEM((n, n), jnp.float32)],
        ),
        compiler_params=pltpu.CompilerParams(
            dimension_semantics=("arbitrary",),
            vmem_limit_bytes=plan.vmem_limit,
        ),
    )(feats, target_f32)
    return loss[0, 0]


class StyleLossPallas:
    """Mirrors the PyTorch StyleLoss module: __init__ stores the target gram."""

    def __init__(self, target_feature, *, stream_bf16=False):
        self._stream_bf16 = stream_bf16
        self.target = gram_matrix_pallas(target_feature, stream_bf16=stream_bf16)

    def __call__(self, x):
        return style_loss_pallas(x, self.target, stream_bf16=self._stream_bf16)


# ---------------------------------------------------------------------------
# Self-test
# ---------------------------------------------------------------------------
def _ref_gram(v):
    a, b, c, d = v.shape
    f = v.reshape(a * b, c * d).astype(jnp.float32)
    return (f @ f.T) / (a * b * c * d)


def _ref_loss(x, tgt):
    g = _ref_gram(x)
    t = _ref_gram(tgt)
    return jnp.mean((g - t) ** 2)


if __name__ == "__main__":
    key = jax.random.PRNGKey(0)

    # (NCHW shape, tile_cols override) -- overrides force the multi-step /
    # ragged-mask / core-split / deep-buffering paths at small test sizes.
    cases = [
        ((2, 4, 16, 16), None),   # K=256: single full-K step
        ((2, 4, 14, 14), None),   # K=196: full-K tile that is not a multiple of 128
        ((2, 4, 30, 30), 256),    # K=900: ragged-K mask + 2-way K split + XLA epilogue
        ((2, 16, 24, 24), 128),   # K=576, n=32: masked multi-step, 3-deep feature buffering
    ]

    for shape, tile_cols in cases:
        key, k1, k2 = jax.random.split(key, 3)
        tgt = jax.random.normal(k1, shape, dtype=jnp.float32)
        x = jax.random.normal(k2, shape, dtype=jnp.float32)

        g = jax.block_until_ready(gram_matrix_pallas(tgt, tile_cols=tile_cols))
        assert jnp.allclose(g, _ref_gram(tgt), rtol=1e-3, atol=1e-5), ("gram", shape)

        t_gram = gram_matrix_pallas(tgt, tile_cols=tile_cols)
        loss = jax.block_until_ready(style_loss_pallas(x, t_gram, tile_cols=tile_cols))
        ref = _ref_loss(x, tgt)
        assert jnp.allclose(loss, ref, rtol=1e-4, atol=1e-6), ("loss", shape, loss, ref)

    # Module-style API with default (auto) tiling.
    key, k1, k2 = jax.random.split(key, 3)
    tgt = jax.random.normal(k1, (2, 4, 16, 16), dtype=jnp.float32)
    x = jax.random.normal(k2, (2, 4, 16, 16), dtype=jnp.float32)
    loss = jax.block_until_ready(StyleLossPallas(tgt)(x))
    assert jnp.allclose(loss, _ref_loss(x, tgt), rtol=1e-4, atol=1e-6)

    print("KERNEL_OK")
</pallas_src>

<mosaic_0001>
module attributes {stable_mosaic.version = 11 : i64} {
  func.func @_partial_gram_kernel(%arg0: i32, %arg1: i32, %arg2: memref<8x256xf32, #tpu.memory_space<vmem>>, %arg3: memref<1x8x8xf32, #tpu.memory_space<vmem>>) attributes {dimension_semantics = [#tpu.dimension_semantics<parallel>, #tpu.dimension_semantics<arbitrary>], iteration_bounds = array<i64: 1, 1>, scalar_prefetch = 0 : i64, scratch_operands = 0 : i64, tpu.core_type = #tpu.core_type<tc>, window_params = [{transform_indices = @transform_0, window_bounds = array<i64: 8, 256>}, {transform_indices = @transform_1, window_bounds = array<i64: 1, 8, 8>}]} {
    %c0_i32 = arith.constant 0 : i32
    %0 = arith.cmpi eq, %arg1, %c0_i32 : i32
    %1 = arith.extui %0 : i1 to i32
    %c0_i32_0 = arith.constant 0 : i32
    %2 = arith.cmpi ne, %1, %c0_i32_0 : i32
    scf.if %2 {
      %cst_10 = arith.constant 0.000000e+00 : f32
      %14 = vector.broadcast %cst_10 : f32 to vector<8x8xf32>
      %c0_11 = arith.constant 0 : index
      %c0_12 = arith.constant 0 : index
      %c0_13 = arith.constant 0 : index
      %15 = vector.load %arg3[%c0_11, %c0_12, %c0_13] : memref<1x8x8xf32, #tpu.memory_space<vmem>>, vector<1x8x8xf32>
      %16 = vector.shape_cast %15 : vector<1x8x8xf32> to vector<8x8xf32>
      %17 = vector.shape_cast %14 : vector<8x8xf32> to vector<1x8x8xf32>
      tpu.vector_store %arg3[%c0_11, %c0_12, %c0_13], %17 {strides = array<i32>} : memref<1x8x8xf32, #tpu.memory_space<vmem>>, vector<1x8x8xf32>,
    } else {
    }
    %c0 = arith.constant 0 : index
    %c0_1 = arith.constant 0 : index
    %3 = vector.load %arg2[%c0, %c0_1] : memref<8x256xf32, #tpu.memory_space<vmem>>, vector<8x256xf32>
    %c0_2 = arith.constant 0 : index
    %c0_3 = arith.constant 0 : index
    %c0_4 = arith.constant 0 : index
    %4 = vector.load %arg3[%c0_2, %c0_3, %c0_4] : memref<1x8x8xf32, #tpu.memory_space<vmem>>, vector<1x8x8xf32>
    %5 = vector.shape_cast %4 : vector<1x8x8xf32> to vector<8x8xf32>
    %cst = arith.constant dense<0.000000e+00> : vector<8x8xf32>
    %6 = tpu.matmul %3, %3, %cst {dimension_numbers = #tpu.dot_dimension_numbers<[1], [1], [0], [0], [0, 0, 1, 0], [], []>} : vector<8x256xf32>, vector<8x256xf32>, vector<8x8xf32> -> vector<8x8xf32>
    %7 = arith.addf %5, %6 : vector<8x8xf32>
    %c0_5 = arith.constant 0 : index
    %c0_6 = arith.constant 0 : index
    %c0_7 = arith.constant 0 : index
    %8 = vector.load %arg3[%c0_5, %c0_6, %c0_7] : memref<1x8x8xf32, #tpu.memory_space<vmem>>, vector<1x8x8xf32>
    %9 = vector.shape_cast %8 : vector<1x8x8xf32> to vector<8x8xf32>
    %10 = vector.shape_cast %7 : vector<8x8xf32> to vector<1x8x8xf32>
    tpu.vector_store %arg3[%c0_5, %c0_6, %c0_7], %10 {strides = array<i32>} : memref<1x8x8xf32, #tpu.memory_space<vmem>>, vector<1x8x8xf32>,
    %c0_i32_8 = arith.constant 0 : i32
    %11 = arith.cmpi eq, %arg1, %c0_i32_8 : i32
    %12 = arith.extui %11 : i1 to i32
    %c0_i32_9 = arith.constant 0 : i32
    %13 = arith.cmpi ne, %12, %c0_i32_9 : i32
    scf.if %13 {
      %c0_10 = arith.constant 0 : index
      %c0_11 = arith.constant 0 : index
      %c0_12 = arith.constant 0 : index
      %14 = vector.load %arg3[%c0_10, %c0_11, %c0_12] : memref<1x8x8xf32, #tpu.memory_space<vmem>>, vector<1x8x8xf32>
      %15 = vector.shape_cast %14 : vector<1x8x8xf32> to vector<8x8xf32>
      %cst_13 = arith.constant 4.8828125E-4 : f32
      %16 = vector.broadcast %cst_13 : f32 to vector<8x8xf32>
      %17 = arith.mulf %15, %16 : vector<8x8xf32>
      %c0_14 = arith.constant 0 : index
      %c0_15 = arith.constant 0 : index
      %c0_16 = arith.constant 0 : index
      %18 = vector.load %arg3[%c0_14, %c0_15, %c0_16] : memref<1x8x8xf32, #tpu.memory_space<vmem>>, vector<1x8x8xf32>
      %19 = vector.shape_cast %18 : vector<1x8x8xf32> to vector<8x8xf32>
      %20 = vector.shape_cast %17 : vector<8x8xf32> to vector<1x8x8xf32>
      tpu.vector_store %arg3[%c0_14, %c0_15, %c0_16], %20 {strides = array<i32>} : memref<1x8x8xf32, #tpu.memory_space<vmem>>, vector<1x8x8xf32>,
    } else {
    }
    return
  }
  func.func @transform_0(%arg0: i32, %arg1: i32) -> (i32, i32) {
    %c1_i32 = arith.constant 1 : i32
    %0 = arith.muli %arg0, %c1_i32 : i32
    %1 = arith.addi %0, %arg1 : i32
    %c0_i32 = arith.constant 0 : i32
    %c0_i32_0 = arith.constant 0 : i32
    return %c0_i32, %1 : i32, i32
  }
  func.func @transform_1(%arg0: i32, %arg1: i32) -> (i32, i32, i32) {
    %c0_i32 = arith.constant 0 : i32
    %c0_i32_0 = arith.constant 0 : i32
    %c0_i32_1 = arith.constant 0 : i32
    return %arg0, %c0_i32, %c0_i32_0 : i32, i32, i32
  }
}

</mosaic_0001>

<llo_original>
// kernel: tpu_custom_call.1
$region0: #{tpu_custom_call.1}
  #allocation0 [shape = 'u32[]', space=smem, size = 0x4, offset = 0x4, fixed_abs, tag = 'smem constant byte address 0x4 - core index']
  #allocation1 [shape = 'u32[144,128]{1,0:T(1,128)}', space=vmem, size = 0x12000, scoped, tag = 'internal scratch']
  %s0 = inlined_call_operand.hbm [shape: f32[8,256], index: 0, kind: input, shape index: {}]
  %s1 = inlined_call_operand.hbm [shape: f32[1,8,8], index: 1, kind: output, shape index: {}]
  %s2 = sld [smem:[#allocation0]]
  $region26: #{tpu_custom_call.1} parent=0
    _
  %s4 = ssub.s32 1, %s2
  %s5 = scalar_select 0, %s4, %s2
  $region1: #{tpu_custom_call.1} parent=0
    #allocation2 [shape = 'u8[8192]{0}', space=vmem, size = 0x2000, scoped, tag = 'input window, operand 0, single buffered']
    #allocation3 [shape = 's32[1]{0}', space=sflag, size = 0x4, scoped, tag = 'scoped memory for tpu_custom_call.1']
    #allocation4 [shape = 's32[1]{0}', space=sflag, size = 0x4, scoped, tag = 'scoped memory for tpu_custom_call.1']
    #allocation5 [shape = 'u8[4096]{0}', space=vmem, size = 0x1000, scoped, tag = 'output window, operand 0, single buffered']
    %6 = vsyncpa [#allocation3], 0
    %7 = vsyncpa [#allocation4], 0
    // Predicated region
    $region2: #{tpu_custom_call.1} parent=1 // pred_check
      _
    $region3: #{tpu_custom_call.1} parent=1 // pred_check_branch
      %9 = sbr.rel (0) target = $region5
    $region4: #{tpu_custom_call.1} parent=1 // pred_region
      %s10 = sadd.s32 0, 0
      %s11 = smul.u32 2, %s10
      %s13 = ssub.s32 256, 256
      %14 = vsyncadd [#allocation3], %s13
      %s15 = smul.addr %s11, 128
      %s16 = scalar_lea.hbm %s0, %s15
      %s18 = sshll.u32 [#allocation2], 4
      %s19 = int_to_ptr.vmem [resolvable:$true] %s18
      %21 = dma.hbm_to_vmem [thread:$0]  %s16, 256, %s19, [#allocation3]
    $region5: #{tpu_custom_call.1} parent=1 // pred_fallthru
      _
    // Predicated region
    $region6: #{tpu_custom_call.1} parent=1 // pred_check
      _
    $region7: #{tpu_custom_call.1} parent=1 // pred_check_branch
      %23 = sbr.rel (0) target = $region9
    $region8: #{tpu_custom_call.1} parent=1 // pred_region
      %24 = dma.done [#allocation3], 256
    $region9: #{tpu_custom_call.1} parent=1 // pred_fallthru
      _
    %s25 = sadd.s32 0, 0
    %s26 = smul.u32 2, %s25
    %p27 = scmp.eq.s32.totalorder 0, 0
    // Predicated region
    $region10: #{tpu_custom_call.1} parent=1 // pred_check
      %p28 = pneg %p27
    $region11: #{tpu_custom_call.1} parent=1 // pred_check_branch
      %30 = sbr.rel (%p28) target = $region13
    $region12: #{tpu_custom_call.1} parent=1 // pred_region
      %vm31 = vcmask 64512
      %32 = vst.msk [vmem:[#allocation5] sm:$0xff] %vm31, 0.0
    $region13: #{tpu_custom_call.1} parent=1 // pred_fallthru
      _
    %v33 = vld [vmem:[#allocation2] sm:$0xff]
    %v34 = vld [vmem:[#allocation2 + $0x8] sm:$0xff]
    %v35 = vld [vmem:[#allocation5] sm:$0xff]
    %36 = vmatprep.subr.mxu0 %v34
    %37 = vmatpush1.xpose.msra.mxu0 %v33
    %38 = vmatprep.subr.mxu0 0.0
    %39 = vmatpush1.xpose.msra.mxu0 0.0
    %40 = vmatprep.subr.mxu0 0.0
    %41 = vmatpush1.xpose.msra.mxu0 0.0
    %42 = vmatprep.subr.mxu0 0.0
    %43 = vmatpush1.xpose.msra.mxu0 0.0
    %44 = vmatprep.subr.mxu0 0.0
    %45 = vmatpush1.xpose.msra.mxu0 0.0
    %46 = vmatprep.subr.mxu0 0.0
    %47 = vmatpush1.xpose.msra.mxu0 0.0
    %48 = vmatprep.subr.mxu0 0.0
    %49 = vmatpush1.xpose.msra.mxu0 0.0
    %50 = vmatprep.subr.mxu0 0.0
    %51 = vmatpush1.xpose.msra.mxu0 0.0
    %52 = vmatprep.subr.mxu0 0.0
    %53 = vmatpush1.xpose.msra.mxu0 0.0
    %54 = vmatprep.subr.mxu0 0.0
    %55 = vmatpush1.xpose.msra.mxu0 0.0
    %56 = vmatprep.subr.mxu0 0.0
    %57 = vmatpush1.xpose.msra.mxu0 0.0
    %58 = vmatprep.subr.mxu0 0.0
    %59 = vmatpush1.xpose.msra.mxu0 0.0
    %60 = vmatprep.subr.mxu0 0.0
    %61 = vmatpush1.xpose.msra.mxu0 0.0
    %62 = vmatprep.subr.mxu0 0.0
    %63 = vmatpush1.xpose.msra.mxu0 0.0
    %64 = vmatprep.subr.mxu0 0.0
    %65 = vmatpush1.xpose.msra.mxu0 0.0
    %66 = vmatprep.subr.mxu0 0.0
    %67 = vmatpush1.xpose.msra.mxu0 0.0
    %68 = vmatprep.subr.mxu0 0.0
    %69 = vmatpush1.xpose.msra.mxu0 0.0
    %70 = vmatprep.subr.mxu0 0.0
    %71 = vmatpush1.xpose.msra.mxu0 0.0
    %72 = vmatprep.subr.mxu0 0.0
    %73 = vmatpush1.xpose.msra.mxu0 0.0
    %74 = vmatprep.subr.mxu0 0.0
    %75 = vmatpush1.xpose.msra.mxu0 0.0
    %76 = vmatprep.subr.mxu0 0.0
    %77 = vmatpush1.xpose.msra.mxu0 0.0
    %78 = vmatprep.subr.mxu0 0.0
    %79 = vmatpush1.xpose.msra.mxu0 0.0
    %80 = vmatprep.subr.mxu0 0.0
    %81 = vmatpush1.xpose.msra.mxu0 0.0
    %82 = vmatprep.subr.mxu0 0.0
    %83 = vmatpush1.xpose.msra.mxu0 0.0
    %84 = vmatprep.subr.mxu0 0.0
    %85 = vmatpush1.xpose.msra.mxu0 0.0
    %86 = vmatprep.subr.mxu0 0.0
    %87 = vmatpush1.xpose.msra.mxu0 0.0
    %88 = vmatprep.subr.mxu0 0.0
    %89 = vmatpush1.xpose.msra.mxu0 0.0
    %90 = vmatprep.subr.mxu0 0.0
    %91 = vmatpush1.xpose.msra.mxu0 0.0
    %92 = vmatprep.subr.mxu0 0.0
    %93 = vmatpush1.xpose.msra.mxu0 0.0
    %94 = vmatprep.subr.mxu0 0.0
    %95 = vmatpush1.xpose.msra.mxu0 0.0
    %96 = vmatprep.subr.mxu0 0.0
    %97 = vmatpush1.xpose.msra.mxu0 0.0
    %98 = vmatprep.subr.mxu0 0.0
    %99 = vmatpush1.xpose.msra.mxu0 0.0
    %100 = vmatprep.mubr.f32.mxu0 %v34
    %101 = vmatmul.mubr.f32.gmra.mrb[0].mxu0 %v33
    %v102 = vpop.f32.mrb[0].mxu0
    %v103 = vadd.f32 0.0, %v102
    %v104 = vpop.f32.mrb[0].mxu0
    %105 = vdwg.mxu0
    %v106 = vadd.f32 %v35, %v103
    %vm107 = vcmask 64512
    %108 = vst.msk [vmem:[#allocation5] sm:$0xff] %vm107, %v106
    // Predicated region
    $region14: #{tpu_custom_call.1} parent=1 // pred_check
      %p109 = pneg %p27
    $region15: #{tpu_custom_call.1} parent=1 // pred_check_branch
      %111 = sbr.rel (%p109) target = $region17
    $region16: #{tpu_custom_call.1} parent=1 // pred_region
      %v112 = vld [vmem:[#allocation5] sm:$0xff]
      %v113 = vmul.f32 %v112, 0.00048828125
      %114 = vst.msk [vmem:[#allocation5] sm:$0xff] %vm107, %v113
    $region17: #{tpu_custom_call.1} parent=1 // pred_fallthru
      _
    // Predicated region
    $region18: #{tpu_custom_call.1} parent=1 // pred_check
      _
    $region19: #{tpu_custom_call.1} parent=1 // pred_check_branch
      %116 = sbr.rel (0) target = $region21
    $region20: #{tpu_custom_call.1} parent=1 // pred_region
      %s118 = ssub.s32 128, 128
      %119 = vsyncadd [#allocation4], %s118
      %s121 = sshll.u32 [#allocation5], 4
      %s122 = int_to_ptr.vmem [resolvable:$true] %s121
      %124 = dma.vmem_to_hbm [thread:$0]  %s122, 128, %s1, [#allocation4]
    $region21: #{tpu_custom_call.1} parent=1 // pred_fallthru
      _
    // Predicated region
    $region22: #{tpu_custom_call.1} parent=1 // pred_check
      _
    $region23: #{tpu_custom_call.1} parent=1 // pred_check_branch
      %126 = sbr.rel (0) target = $region25
    $region24: #{tpu_custom_call.1} parent=1 // pred_region
      %127 = dma.done [#allocation4], 128
    $region25: #{tpu_custom_call.1} parent=1 // pred_fallthru
      _
    %128 = vsyncpa [#allocation3], 1
    %129 = vsyncpa [#allocation4], 1

</llo_original>
